<compile_context>
chip_gen: v5e
topology: v5e:2x2
jax: 0.10.0
libtpu: 0.0.40
codegen_flags: <defaults>
</compile_context>

<pallas_src>
import functools
import math

import jax
import jax.numpy as jnp
from jax.experimental import pallas as pl
from jax.experimental.pallas import tpu as pltpu


def make_sinusoidal_pe(seq_len: int, d_model: int, dtype=jnp.float32):
    """Precompute the (seq_len, d_model) sinusoidal table (module buffer)."""
    position = jnp.arange(seq_len, dtype=jnp.float32)[:, None]               # (S, 1)
    div_term = jnp.exp(
        jnp.arange(0, d_model, 2, dtype=jnp.float32) * (-math.log(10000.0) / d_model)
    )                                                                         # (D/2,)
    angles = position * div_term                                              # (S, D/2)
    pe = jnp.zeros((seq_len, d_model), jnp.float32)
    pe = pe.at[:, 0::2].set(jnp.sin(angles))
    pe = pe.at[:, 1::2].set(jnp.cos(angles))
    return pe.astype(dtype)


# ----------------------------------------------------------------------------- kernels


def _pe_add_kernel(x_ref, pe_ref, o_ref):
    # Single vectorized (bb, tb, D) add per grid step; d_model on the lane axis.
    o_ref[...] = x_ref[...] + pe_ref[...][None].astype(x_ref.dtype)


def _uniform_bits_u32(idx, key):
    """Stateless splitmix32-style hash -> uniform 32 random bits per element."""
    x = idx + key * jnp.uint32(0x9E3779B9)
    x = (x ^ (x >> 16)) * jnp.uint32(0x7FEB352D)
    x = (x ^ (x >> 15)) * jnp.uint32(0x846CA68B)
    return x ^ (x >> 16)


def _pe_add_dropout_kernel(seed_ref, x_ref, pe_ref, o_ref, *, rate, seq, d_model):
    bb, tb, dm = x_ref.shape
    y = x_ref[...] + pe_ref[...][None].astype(x_ref.dtype)

    # Global element index (unique across the whole (B, S, D) array & grid).
    b0 = (pl.program_id(1) * bb).astype(jnp.uint32)
    s0 = (pl.program_id(0) * tb).astype(jnp.uint32)
    bi = jax.lax.broadcasted_iota(jnp.uint32, (bb, tb, dm), 0) + b0
    si = jax.lax.broadcasted_iota(jnp.uint32, (bb, tb, dm), 1) + s0
    di = jax.lax.broadcasted_iota(jnp.uint32, (bb, tb, dm), 2)
    idx = (bi * jnp.uint32(seq) + si) * jnp.uint32(d_model) + di

    bits = _uniform_bits_u32(idx, seed_ref[0].astype(jnp.uint32))
    keep_prob = 1.0 - rate
    # keep iff bits < keep_prob * 2^32 (bias < 2^-32 from the clamp).
    thresh = jnp.uint32(min(int(keep_prob * 4294967296.0), 4294967295))
    keep = bits < thresh
    o_ref[...] = jnp.where(keep, y * jnp.asarray(1.0 / keep_prob, y.dtype),
                           jnp.zeros_like(y))


# ----------------------------------------------------------------------------- tiling


def _select_tiles(batch: int, seq: int, d_model: int, itemsize: int):
    """Byte- and dtype-aware (batch_block, seq_block) selection."""
    if itemsize >= 4:
        sub_min = 8          # f32 sublane packing
    elif itemsize == 2:
        sub_min = 16         # bf16
    else:
        sub_min = 32         # int8 / fp8

    row_bytes = d_model * itemsize
    X_TILE_TARGET = 2 << 20  # ~2 MiB x-tile: >=85% of HBM roofline, fits every chip

    if seq % sub_min == 0:
        tb = sub_min
        while (tb * 2 <= seq and seq % (tb * 2) == 0
               and tb * 2 * row_bytes <= X_TILE_TARGET):
            tb *= 2
    else:
        tb = seq             # full-extent seq block is always a legal block shape

    # Batch blocking when the (tb, d_model) slab is small: fewer, bigger steps.
    bb = 1
    while (bb * 2 <= batch and batch % (bb * 2) == 0
           and bb * 2 * tb * row_bytes <= X_TILE_TARGET):
        bb *= 2

    # Guarantee >=2 grid steps so a v7x megacore can feed both TensorCores.
    if (seq // tb) * (batch // bb) == 1:
        if tb % (2 * sub_min) == 0:
            tb //= 2
        elif bb > 1:
            bb //= 2
    return bb, tb


# ----------------------------------------------------------------------------- wrapper


def positional_encoding(x, pe, *, dropout_rate=0.0, training=False, seed=0):
    """y = dropout(x + pe[:seq]).  x: (B, S, D); pe: (seq_len, D), seq_len >= S."""
    batch, seq, d_model = x.shape
    seq_len, pe_d = pe.shape
    assert seq_len >= seq and pe_d == d_model

    itemsize = jnp.dtype(x.dtype).itemsize
    bb, tb = _select_tiles(batch, seq, d_model, itemsize)

    # Full buffer is passed (no per-call slice/cast); a block (tb, D) into the
    # (seq_len, D) buffer is legal when tb % 8 == 0.  Rare fallback: slice.
    pe_buf = pe if (tb % 8 == 0 or tb == seq_len) else pe[:seq]

    # Outer axis = seq blocks, inner axis = batch blocks:  pe's block index
    # depends only on the outer axis, so its DMA is skipped across the inner loop.
    grid = (seq // tb, batch // bb)

    row_bytes = d_model * itemsize
    x_tile_bytes = bb * tb * row_bytes
    pe_tile_bytes = tb * row_bytes
    needed = 2 * (2 * x_tile_bytes + pe_tile_bytes) + (1 << 20)   # dbl-buffered + margin
    cparams = pltpu.CompilerParams(
        dimension_semantics=("parallel", "arbitrary"),
        vmem_limit_bytes=int(min(max(needed, 16 << 20), 64 << 20)),
    )
    out_shape = jax.ShapeDtypeStruct(x.shape, x.dtype)

    if training and dropout_rate > 0.0:
        kernel = functools.partial(_pe_add_dropout_kernel, rate=float(dropout_rate),
                                   seq=seq, d_model=d_model)
        seed_arr = jnp.asarray([seed], dtype=jnp.int32)
        grid_spec = pltpu.PrefetchScalarGridSpec(
            num_scalar_prefetch=1,
            grid=grid,
            in_specs=[
                pl.BlockSpec((bb, tb, d_model), lambda s, b, seed_r: (b, s, 0)),
                pl.BlockSpec((tb, d_model), lambda s, b, seed_r: (s, 0)),
            ],
            out_specs=pl.BlockSpec((bb, tb, d_model), lambda s, b, seed_r: (b, s, 0)),
        )
        return pl.pallas_call(
            kernel, out_shape=out_shape, grid_spec=grid_spec, compiler_params=cparams,
        )(seed_arr, x, pe_buf)

    return pl.pallas_call(
        _pe_add_kernel,
        out_shape=out_shape,
        grid=grid,
        in_specs=[
            pl.BlockSpec((bb, tb, d_model), lambda s, b: (b, s, 0)),
            pl.BlockSpec((tb, d_model), lambda s, b: (s, 0)),
        ],
        out_specs=pl.BlockSpec((bb, tb, d_model), lambda s, b: (b, s, 0)),
        compiler_params=cparams,
    )(x, pe_buf)


# ----------------------------------------------------------------------------- demo


if __name__ == "__main__":
    # Small, lane-dense shapes consistent with the module's forward:
    # x: (batch, seq, d_model); pe buffer: (seq_len, d_model) with seq <= seq_len.
    batch, seq, d_model, seq_len = 2, 16, 128, 32
    dropout_p = 0.1

    key = jax.random.PRNGKey(0)
    x = jax.random.normal(key, (batch, seq, d_model), dtype=jnp.float32)
    # Buffer precomputed once at "init", already in the activation dtype.
    pe = make_sinusoidal_pe(seq_len, d_model, dtype=x.dtype)

    # Eval-mode forward (dropout = identity, as in nn.Module.eval()).
    out = positional_encoding(x, pe, dropout_rate=dropout_p, training=False)
    out = jax.block_until_ready(out)

    ref = x + pe[None, :seq, :]
    assert out.shape == x.shape and out.dtype == x.dtype
    assert jnp.allclose(out, ref, atol=1e-6, rtol=1e-6)

    # Training-mode smoke test: dropped elements are exactly 0, kept elements
    # are (x + pe) / keep_prob, zero-fraction is roughly the dropout rate.
    rate = 0.5
    out_tr = positional_encoding(x, pe, dropout_rate=rate, training=True, seed=123)
    out_tr = jax.block_until_ready(out_tr)
    keep_scale = 1.0 / (1.0 - rate)
    zero_frac = float(jnp.mean(out_tr == 0.0))
    assert 0.3 < zero_frac < 0.7, f"unexpected dropout zero fraction {zero_frac}"
    scaled_ref = ref * keep_scale
    max_err = float(jnp.max(jnp.where(out_tr != 0.0, jnp.abs(out_tr - scaled_ref), 0.0)))
    assert max_err < 1e-5, f"kept elements mismatch, max err {max_err}"

    print("KERNEL_OK")
</pallas_src>

<mosaic_0001>
module attributes {stable_mosaic.version = 11 : i64} {
  func.func @_pe_add_kernel(%arg0: i32, %arg1: i32, %arg2: memref<2x8x128xf32, #tpu.memory_space<vmem>>, %arg3: memref<8x128xf32, #tpu.memory_space<vmem>>, %arg4: memref<2x8x128xf32, #tpu.memory_space<vmem>>) attributes {dimension_semantics = [#tpu.dimension_semantics<parallel>, #tpu.dimension_semantics<arbitrary>], iteration_bounds = array<i64: 2, 1>, scalar_prefetch = 0 : i64, scratch_operands = 0 : i64, tpu.core_type = #tpu.core_type<tc>, window_params = [{transform_indices = @transform_0, window_bounds = array<i64: 2, 8, 128>}, {transform_indices = @transform_1, window_bounds = array<i64: 8, 128>}, {transform_indices = @transform_2, window_bounds = array<i64: 2, 8, 128>}]} {
    %c0 = arith.constant 0 : index
    %c0_0 = arith.constant 0 : index
    %c0_1 = arith.constant 0 : index
    %0 = vector.load %arg2[%c0, %c0_0, %c0_1] : memref<2x8x128xf32, #tpu.memory_space<vmem>>, vector<2x8x128xf32>
    %c0_2 = arith.constant 0 : index
    %c0_3 = arith.constant 0 : index
    %1 = vector.load %arg3[%c0_2, %c0_3] : memref<8x128xf32, #tpu.memory_space<vmem>>, vector<8x128xf32>
    %2 = vector.shape_cast %1 : vector<8x128xf32> to vector<1x8x128xf32>
    %3 = vector.broadcast %2 : vector<1x8x128xf32> to vector<2x8x128xf32>
    %4 = arith.addf %0, %3 : vector<2x8x128xf32>
    %c0_4 = arith.constant 0 : index
    %c0_5 = arith.constant 0 : index
    %c0_6 = arith.constant 0 : index
    %5 = vector.load %arg4[%c0_4, %c0_5, %c0_6] : memref<2x8x128xf32, #tpu.memory_space<vmem>>, vector<2x8x128xf32>
    tpu.vector_store %arg4[%c0_4, %c0_5, %c0_6], %4 {strides = array<i32>} : memref<2x8x128xf32, #tpu.memory_space<vmem>>, vector<2x8x128xf32>,
    return
  }
  func.func @transform_0(%arg0: i32, %arg1: i32) -> (i32, i32, i32) {
    %c0_i32 = arith.constant 0 : i32
    %c0_i32_0 = arith.constant 0 : i32
    return %arg1, %arg0, %c0_i32 : i32, i32, i32
  }
  func.func @transform_1(%arg0: i32, %arg1: i32) -> (i32, i32) {
    %c0_i32 = arith.constant 0 : i32
    %c0_i32_0 = arith.constant 0 : i32
    return %arg0, %c0_i32 : i32, i32
  }
  func.func @transform_2(%arg0: i32, %arg1: i32) -> (i32, i32, i32) {
    %c0_i32 = arith.constant 0 : i32
    %c0_i32_0 = arith.constant 0 : i32
    return %arg1, %arg0, %c0_i32 : i32, i32, i32
  }
}

</mosaic_0001>

<llo_original>
// kernel: tpu_custom_call.1
$region0: #{tpu_custom_call.1}
  #allocation0 [shape = 'u32[]', space=smem, size = 0x4, offset = 0x4, fixed_abs, tag = 'smem constant byte address 0x4 - core index']
  #allocation1 [shape = 'u32[72,128]{1,0:T(1,128)}', space=vmem, size = 0x9000, scoped, tag = 'internal scratch']
  %s0 = inlined_call_operand.hbm [shape: f32[2,16,128], index: 0, kind: input, shape index: {}]
  %s1 = inlined_call_operand.hbm [shape: f32[32,128], index: 1, kind: input, shape index: {}]
  %s2 = inlined_call_operand.hbm [shape: f32[2,16,128], index: 2, kind: output, shape index: {}]
  %s3 = sld [smem:[#allocation0]]
  $region49: #{tpu_custom_call.1} parent=0
    _
  %s5 = ssub.s32 1, %s3
  %s6 = scalar_select 0, %s5, %s3
  $region1: #{tpu_custom_call.1} parent=0
    #allocation2 [shape = 'u8[16384]{0}', space=vmem, size = 0x4000, scoped, tag = 'input window, operand 0']
    #allocation3 [shape = 's32[2]{0}', space=sflag, size = 0x8, scoped, tag = 'scoped memory for tpu_custom_call.1']
    #allocation4 [shape = 's32[2]{0}', space=sflag, size = 0x8, scoped, tag = 'scoped memory for tpu_custom_call.1']
    #allocation5 [shape = 'u8[8192]{0}', space=vmem, size = 0x2000, scoped, tag = 'input window, operand 1']
    #allocation6 [shape = 's32[2]{0}', space=sflag, size = 0x8, scoped, tag = 'scoped memory for tpu_custom_call.1']
    #allocation7 [shape = 'u8[16384]{0}', space=vmem, size = 0x4000, scoped, tag = 'output window, operand 0']
    %7 = vsyncpa [#allocation3], 0
    %s8 = scalar_lea.sflag [#allocation3], 1
    %9 = vsyncpa %s8, 0
    %10 = vsyncpa [#allocation6], 0
    %s11 = scalar_lea.sflag [#allocation6], 1
    %12 = vsyncpa %s11, 0
    %13 = vsyncpa [#allocation4], 0
    %s14 = scalar_lea.sflag [#allocation4], 1
    %15 = vsyncpa %s14, 0
    loop: start=0, step=1, limit=4
    $region2: #{tpu_custom_call.1} parent=1 // loop_pre_header
      _
    $region3: #{tpu_custom_call.1} parent=1 // loop_header
      %s17 = sphi 0, %s21
      %p18 = scmp.ge.s32.totalorder %s17, 4
      %s24 = sphi 0, %s36
      %s25 = sphi 0, %s32
      %s26 = sphi 0, %s24
      %s27 = sphi 0, %s25
      %s28 = sphi 0, %s26
      %s29 = sphi 0, %s27
      %s41 = sphi 0, %s43
      %s44 = sphi 0, %s41
      %s45 = sphi 0, %s44
      %s61 = sphi 0, %s45
      %s67 = sphi 0, %s69
      %s70 = sphi 0, %s67
      %s71 = sphi 0, %s70
      %s87 = sphi 0, %s71
      %s95 = sphi 0, %s97
      %s98 = sphi 0, %s95
      %s99 = sphi 0, %s98
      %s115 = sphi 0, %s99
    $region4: #{tpu_custom_call.1} parent=1 // loop_header_branch
      %20 = sbr.rel (%p18) target = $region8
    $region5: #{tpu_custom_call.1} parent=1 // loop_body
      %s22 = ssub.s32 %s17, 1
      %s23 = ssub.s32 %s17, 2
      %s30 = sadd.s32 1, %s25
      %p31 = scmp.ge.s32.totalorder %s30, 1
      %s32 = scalar_select %p31, 0, %s30
      %s33 = sadd.s32 1, %s24
      %s34 = scalar_select %p31, %s33, %s24
      %p35 = scmp.ge.s32.totalorder %s34, 2
      %s36 = scalar_select %p35, 0, %s34
      %s37 = ssub.s32 %s25, %s32
      %s38 = ssub.s32 %s24, %s36
      %s39 = sor.u32 %s37, %s38
      %p40 = scmp.eq.s32.totalorder %s39, 0
      %s42 = sadd.s32 %s41, 1
      %s43 = scalar_select %p40, %s41, %s42
      %p46 = pneg %p40
      %p47 = scmp.eq.s32.totalorder %s17, 1
      %p48 = por %p46, %p47
      %p49 = scmp.ne.s32.totalorder %s41, %s44
      %p50 = scmp.eq.s32.totalorder %s17, 0
      %p51 = por %p49, %p50
      %p52 = scmp.ne.s32.totalorder %s41, %s44
      %p53 = scmp.eq.s32.totalorder %s22, 1
      %p54 = por %p52, %p53
      %p55 = scmp.ne.s32.totalorder %s44, %s45
      %p56 = scmp.eq.s32.totalorder %s22, 0
      %p57 = por %p55, %p56
      %p58 = scmp.ne.s32.totalorder %s44, %s45
      %p59 = scmp.eq.s32.totalorder %s23, 1
      %p60 = por %p58, %p59
      %p62 = scmp.ne.s32.totalorder %s45, %s61
      %p63 = scmp.eq.s32.totalorder %s23, 0
      %p64 = por %p62, %p63
      %s65 = ssub.s32 %s24, %s36
      %p66 = scmp.eq.s32.totalorder %s65, 0
      %s68 = sadd.s32 %s67, 1
      %s69 = scalar_select %p66, %s67, %s68
      %p72 = pneg %p66
      %p73 = scmp.eq.s32.totalorder %s17, 1
      %p74 = por %p72, %p73
      %p75 = scmp.ne.s32.totalorder %s67, %s70
      %p76 = scmp.eq.s32.totalorder %s17, 0
      %p77 = por %p75, %p76
      %p78 = scmp.ne.s32.totalorder %s67, %s70
      %p79 = scmp.eq.s32.totalorder %s22, 1
      %p80 = por %p78, %p79
      %p81 = scmp.ne.s32.totalorder %s70, %s71
      %p82 = scmp.eq.s32.totalorder %s22, 0
      %p83 = por %p81, %p82
      %p84 = scmp.ne.s32.totalorder %s70, %s71
      %p85 = scmp.eq.s32.totalorder %s23, 1
      %p86 = por %p84, %p85
      %p88 = scmp.ne.s32.totalorder %s71, %s87
      %p89 = scmp.eq.s32.totalorder %s23, 0
      %p90 = por %p88, %p89
      %s91 = ssub.s32 %s25, %s32
      %s92 = ssub.s32 %s24, %s36
      %s93 = sor.u32 %s91, %s92
      %p94 = scmp.eq.s32.totalorder %s93, 0
      %s96 = sadd.s32 %s95, 1
      %s97 = scalar_select %p94, %s95, %s96
      %p100 = pneg %p94
      %p101 = scmp.eq.s32.totalorder %s17, 1
      %p102 = por %p100, %p101
      %p103 = scmp.ne.s32.totalorder %s95, %s98
      %p104 = scmp.eq.s32.totalorder %s17, 0
      %p105 = por %p103, %p104
      %p106 = scmp.ne.s32.totalorder %s95, %s98
      %p107 = scmp.eq.s32.totalorder %s22, 1
      %p108 = por %p106, %p107
      %p109 = scmp.ne.s32.totalorder %s98, %s99
      %p110 = scmp.eq.s32.totalorder %s22, 0
      %p111 = por %p109, %p110
      %p112 = scmp.ne.s32.totalorder %s98, %s99
      %p113 = scmp.eq.s32.totalorder %s23, 1
      %p114 = por %p112, %p113
      %p116 = scmp.ne.s32.totalorder %s99, %s115
      %p117 = scmp.eq.s32.totalorder %s23, 0
      %p118 = por %p116, %p117
      %p119 = scmp.le.s32.totalorder 1, %s17
      %p120 = scmp.lt.s32.totalorder %s17, 3
      %p121 = pnand %p119, %p120
      %p122 = pneg %p121
      // Predicated region
      $region9: #{tpu_custom_call.1} parent=5 // pred_check
        _
      $region10: #{tpu_custom_call.1} parent=5 // pred_check_branch
        %124 = sbr.rel (%p121) target = $region12
      $region11: #{tpu_custom_call.1} parent=5 // pred_region
        %s125 = ssub.s32 %s17, 1
      $region12: #{tpu_custom_call.1} parent=5 // pred_fallthru
        _
      %p126 = scmp.lt.s32.totalorder %s17, 2
      // Predicated region
      $region13: #{tpu_custom_call.1} parent=5 // pred_check
        %p127 = pneg %p126
      $region14: #{tpu_custom_call.1} parent=5 // pred_check_branch
        %129 = sbr.rel (%p127) target = $region16
      $region15: #{tpu_custom_call.1} parent=5 // pred_region
        // Predicated region
        $region17: #{tpu_custom_call.1} parent=15 // pred_check
          %p130 = pneg %p51
        $region18: #{tpu_custom_call.1} parent=15 // pred_check_branch
          %132 = sbr.rel (%p130) target = $region20
        $region19: #{tpu_custom_call.1} parent=15 // pred_region
          %s133 = sand.u32 %s41, 1
          %s134 = scalar_lea.sflag [#allocation3], %s133
          %s135 = sand.u32 %s41, 1
          %s136 = smul.addr %s135, 16
          %s137 = scalar_lea.vmem [#allocation2], %s136
          %s138 = smul.u32 2, %s25
          %140 = vsyncadd %s134, 0
          %s141 = smul.addr %s138, 2
          %s142 = sadd.s32 %s24, %s141
          %s143 = smul.addr %s142, 8
          %s144 = scalar_lea.hbm %s0, %s143
          %s145 = sshll.u32 %s144, 4
          %s146 = int_to_ptr.hbm [resolvable:$true] %s145
          %s147 = sshll.u32 %s137, 4
          %s148 = int_to_ptr.vmem [resolvable:$true] %s147
          %153 = dma.hbm_to_vmem [thread:$0]  %s146, 256, %s148, %s134, 256, 128, 8
        $region20: #{tpu_custom_call.1} parent=15 // pred_fallthru
          _
        // Predicated region
        $region21: #{tpu_custom_call.1} parent=15 // pred_check
          %p154 = pneg %p77
        $region22: #{tpu_custom_call.1} parent=15 // pred_check_branch
          %156 = sbr.rel (%p154) target = $region24
        $region23: #{tpu_custom_call.1} parent=15 // pred_region
          %s157 = sand.u32 %s67, 1
          %s158 = scalar_lea.sflag [#allocation6], %s157
          %s159 = sand.u32 %s67, 1
          %s160 = smul.addr %s159, 8
          %s161 = scalar_lea.vmem [#allocation5], %s160
          %163 = vsyncadd %s158, 0
          %s164 = smul.addr %s24, 8
          %s165 = scalar_lea.hbm %s1, %s164
          %s167 = sshll.u32 %s165, 4
          %s168 = int_to_ptr.hbm [resolvable:$true] %s167
          %s169 = sshll.u32 %s161, 4
          %s170 = int_to_ptr.vmem [resolvable:$true] %s169
          %172 = dma.hbm_to_vmem [thread:$0]  %s168, 128, %s170, %s158
        $region24: #{tpu_custom_call.1} parent=15 // pred_fallthru
          _
      $region16: #{tpu_custom_call.1} parent=5 // pred_fallthru
        _
      %p173 = scmp.le.s32.totalorder 1, %s17
      %p174 = scmp.lt.s32.totalorder %s17, 3
      %p175 = pnand %p173, %p174
      %p176 = pneg %p175
      // Predicated region
      $region25: #{tpu_custom_call.1} parent=5 // pred_check
        _
      $region26: #{tpu_custom_call.1} parent=5 // pred_check_branch
        %178 = sbr.rel (%p175) target = $region28
      $region27: #{tpu_custom_call.1} parent=5 // pred_region
        %s179 = ssub.s32 %s17, 1
        %s180 = sand.u32 %s44, 1
        %s181 = scalar_lea.sflag [#allocation3], %s180
        %s182 = sand.u32 %s44, 1
        %s183 = smul.addr %s182, 16
        %s184 = scalar_lea.vmem [#allocation2], %s183
        // Predicated region
        $region29: #{tpu_custom_call.1} parent=27 // pred_check
          %p185 = pneg %p57
        $region30: #{tpu_custom_call.1} parent=27 // pred_check_branch
          %187 = sbr.rel (%p185) target = $region32
        $region31: #{tpu_custom_call.1} parent=27 // pred_region
          %189 = dma.done %s181, 256
        $region32: #{tpu_custom_call.1} parent=27 // pred_fallthru
          _
        %s190 = sand.u32 %s70, 1
        %s191 = scalar_lea.sflag [#allocation6], %s190
        %s192 = sand.u32 %s70, 1
        %s193 = smul.addr %s192, 8
        %s194 = scalar_lea.vmem [#allocation5], %s193
        // Predicated region
        $region33: #{tpu_custom_call.1} parent=27 // pred_check
          %p195 = pneg %p83
        $region34: #{tpu_custom_call.1} parent=27 // pred_check_branch
          %197 = sbr.rel (%p195) target = $region36
        $region35: #{tpu_custom_call.1} parent=27 // pred_region
          %199 = dma.done %s191, 128
        $region36: #{tpu_custom_call.1} parent=27 // pred_fallthru
          _
        %s200 = sand.u32 %s44, 1
        %s201 = scalar_lea.sflag [#allocation3], %s200
        %s202 = sand.u32 %s44, 1
        %s203 = smul.addr %s202, 16
        %s204 = scalar_lea.vmem [#allocation2], %s203
        %p205 = pneg %p57
        %p206 = pneg %p54
        %s207 = sand.u32 %s70, 1
        %s208 = scalar_lea.sflag [#allocation6], %s207
        %s209 = sand.u32 %s70, 1
        %s210 = smul.addr %s209, 8
        %s211 = scalar_lea.vmem [#allocation5], %s210
        %p212 = pneg %p83
        %p213 = pneg %p80
        %p214 = pneg %p111
        %p215 = pneg %p108
        %s216 = sand.u32 %s98, 1
        %s217 = scalar_lea.sflag [#allocation4], %s216
        %s218 = sand.u32 %s98, 1
        %s219 = smul.addr %s218, 16
        %s220 = scalar_lea.vmem [#allocation7], %s219
        %s221 = smul.u32 2, %s27
        %s222 = smul.u32 2, %s27
        %v223 = vld [vmem:[%s184] sm:$0xff]
        %v224 = vld [vmem:[%s184 + $0x8] sm:$0xff]
        %v225 = vld [vmem:[%s194] sm:$0xff]
        %v226 = vadd.f32 %v223, %v225
        %v227 = vadd.f32 %v224, %v225
        %228 = vst [vmem:[%s220] sm:$0xff] %v226
        %229 = vst [vmem:[%s220 + $0x8] sm:$0xff] %v227
        %s230 = sand.u32 %s98, 1
        %s231 = scalar_lea.sflag [#allocation4], %s230
        %s232 = sand.u32 %s98, 1
        %s233 = smul.addr %s232, 16
        %s234 = scalar_lea.vmem [#allocation7], %s233
        // Predicated region
        $region37: #{tpu_custom_call.1} parent=27 // pred_check
          %p235 = pneg %p108
        $region38: #{tpu_custom_call.1} parent=27 // pred_check_branch
          %237 = sbr.rel (%p235) target = $region40
        $region39: #{tpu_custom_call.1} parent=27 // pred_region
          %s238 = smul.u32 2, %s27
          %240 = vsyncadd %s231, 0
          %s241 = smul.addr %s238, 2
          %s242 = sadd.s32 %s26, %s241
          %s243 = smul.addr %s242, 8
          %s244 = scalar_lea.hbm %s2, %s243
          %s245 = sshll.u32 %s234, 4
          %s246 = int_to_ptr.vmem [resolvable:$true] %s245
          %s247 = sshll.u32 %s244, 4
          %s248 = int_to_ptr.hbm [resolvable:$true] %s247
          %253 = dma.vmem_to_hbm [thread:$0]  %s246, 256, %s248, %s231, 128, 256, 8
        $region40: #{tpu_custom_call.1} parent=27 // pred_fallthru
          _
      $region28: #{tpu_custom_call.1} parent=5 // pred_fallthru
        _
      %p254 = scmp.le.s32.totalorder 2, %s17
      // Predicated region
      $region41: #{tpu_custom_call.1} parent=5 // pred_check
        %p255 = pneg %p254
      $region42: #{tpu_custom_call.1} parent=5 // pred_check_branch
        %257 = sbr.rel (%p255) target = $region44
      $region43: #{tpu_custom_call.1} parent=5 // pred_region
        %s258 = ssub.s32 %s17, 2
        // Predicated region
        $region45: #{tpu_custom_call.1} parent=43 // pred_check
          %p259 = pneg %p114
        $region46: #{tpu_custom_call.1} parent=43 // pred_check_branch
          %261 = sbr.rel (%p259) target = $region48
        $region47: #{tpu_custom_call.1} parent=43 // pred_region
          %s262 = sand.u32 %s99, 1
          %s263 = scalar_lea.sflag [#allocation4], %s262
          %s264 = sand.u32 %s99, 1
          %s265 = smul.addr %s264, 16
          %s266 = scalar_lea.vmem [#allocation7], %s265
          %268 = dma.done %s263, 256
        $region48: #{tpu_custom_call.1} parent=43 // pred_fallthru
          _
      $region44: #{tpu_custom_call.1} parent=5 // pred_fallthru
        _
    $region6: #{tpu_custom_call.1} parent=1 // loop_footer
      %s21 = sadd.s32 1, %s17
    $region7: #{tpu_custom_call.1} parent=1 // loop_footer_branch
      %16 = sbr.rel target = $region3
    $region8: #{tpu_custom_call.1} parent=1 // loop_exit
      _
    %269 = vsyncpa [#allocation3], 1
    %s270 = scalar_lea.sflag [#allocation3], 1
    %271 = vsyncpa %s270, 1
    %272 = vsyncpa [#allocation6], 1
    %s273 = scalar_lea.sflag [#allocation6], 1
    %274 = vsyncpa %s273, 1
    %275 = vsyncpa [#allocation4], 1
    %s276 = scalar_lea.sflag [#allocation4], 1
    %277 = vsyncpa %s276, 1

</llo_original>
